<compile_context>
chip_gen: v5e
topology: v5e:2x2
jax: 0.10.0
libtpu: 0.0.40
codegen_flags: <defaults>
</compile_context>

<pallas_src>
import math
import functools

import jax
import jax.numpy as jnp
from jax.experimental import pallas as pl
from jax.experimental.pallas import tpu as pltpu


# ---------------------------------------------------------------------------
# Tile / VMEM policy
# ---------------------------------------------------------------------------
LIN_TM = 256      # rows per linear tile (align 8)
LIN_TN = 512      # N tile cap when N > 2048 (align 128)
LIN_TK = 512      # K tile cap when K > 2048 (align 128)
FULL_DIM_CAP = 2048  # use full-width N / full-depth K tiles up to this size


def _vmem_budget_bytes():
    """Per-generation VMEM budget (v5e/v6e: 128 MiB phys, v7x: 64 MiB phys)."""
    cap = 64 * 1024 * 1024  # v7x-safe fallback
    try:
        info = pltpu.get_tpu_info()
        cap = int(getattr(info, "vmem_capacity_bytes", cap))
    except Exception:
        pass
    return int(cap * 0.7)


_VMEM_BUDGET = _vmem_budget_bytes()


def _pick_tile(dim, cap, align):
    """Tile that is either the full dim or an `align`-multiple divisor <= cap."""
    if dim <= cap:
        return dim
    for t in range(cap, align - 1, -align):
        if dim % t == 0:
            return t
    return dim  # full dim is always a legal block


def _attn_vmem_bytes(tq, S, dm, H, w_itemsize):
    kv = 2 * 2 * (S * dm * 2)            # K + V full-S blocks, double-buffered bf16
    qo = 2 * 2 * (tq * dm * 2)           # q block + out block, double-buffered bf16
    msk = 2 * (tq * S * 1)               # int8 mask block
    wts = 2 * (H * tq * S * w_itemsize)  # attention-weights output block
    tmp = 4 * (tq * S * 4)               # in-kernel f32 score/exp temporaries
    return kv + qo + msk + wts + tmp


def _pick_attn_tq(S, dm, H, w_itemsize, budget):
    cands = []
    if S <= 512:
        cands.append(S)
    cands += [t for t in (512, 256, 128, 64, 32, 16, 8) if t < S and S % t == 0]
    if not cands:
        return S
    for t in cands:
        if _attn_vmem_bytes(t, S, dm, H, w_itemsize) <= budget:
            return t
    return cands[-1]


# ---------------------------------------------------------------------------
# Kernel 1: batched / tiled linear     out[g] = x[g or 0] @ w[g] + b[g]
#   weights pre-transposed (K, N) and stored bf16; f32 VMEM accumulator.
# ---------------------------------------------------------------------------
def _linear_kernel(x_ref, w_ref, b_ref, o_ref, acc_ref):
    kk = pl.program_id(3)

    @pl.when(kk == 0)
    def _():
        acc_ref[...] = jnp.zeros_like(acc_ref)

    # bf16 operands on the MXU, f32 accumulation.
    acc_ref[...] += jnp.dot(x_ref[0].astype(jnp.bfloat16),
                            w_ref[0].astype(jnp.bfloat16),
                            preferred_element_type=jnp.float32)

    @pl.when(kk == pl.num_programs(3) - 1)
    def _():
        o_ref[0] = (acc_ref[...] + b_ref[0].astype(jnp.float32)).astype(o_ref.dtype)


def fused_linear_pallas(x_stack, w_stack, b_stack, *, x_shared=False,
                        out_dtype=jnp.bfloat16):
    """x_stack: (Gx, M, K); w_stack: (G, K, N) bf16; b_stack: (G, 1, N) f32.

    Returns (G, M, N) in out_dtype.  If x_shared, the single x slab (Gx == 1) is
    revisited for every group g (grid order puts g inside the M/N tiles, so with
    full-K tiles the shared activation block is read from HBM only once per tile).
    """
    G, K, N = w_stack.shape
    M = x_stack.shape[1]
    tm = _pick_tile(M, LIN_TM, 8)
    tn = N if N <= FULL_DIM_CAP else _pick_tile(N, LIN_TN, 128)
    tk = K if K <= FULL_DIM_CAP else _pick_tile(K, LIN_TK, 128)

    if x_shared:
        x_map = lambda i, j, g, kk: (0, i, kk)
    else:
        x_map = lambda i, j, g, kk: (g, i, kk)

    cost = pl.CostEstimate(
        flops=int(2 * G * M * N * K),
        transcendentals=0,
        bytes_accessed=int(x_stack.size * x_stack.dtype.itemsize
                           + w_stack.size * w_stack.dtype.itemsize
                           + b_stack.size * b_stack.dtype.itemsize
                           + G * M * N * jnp.dtype(out_dtype).itemsize),
    )

    return pl.pallas_call(
        _linear_kernel,
        out_shape=jax.ShapeDtypeStruct((G, M, N), out_dtype),
        grid=(M // tm, N // tn, G, K // tk),
        in_specs=[
            pl.BlockSpec((1, tm, tk), x_map),
            pl.BlockSpec((1, tk, tn), lambda i, j, g, kk: (g, kk, j)),
            pl.BlockSpec((1, 1, tn), lambda i, j, g, kk: (g, 0, j)),
        ],
        out_specs=pl.BlockSpec((1, tm, tn), lambda i, j, g, kk: (g, i, j)),
        scratch_shapes=[pltpu.VMEM((tm, tn), jnp.float32)],
        compiler_params=pltpu.CompilerParams(
            dimension_semantics=("parallel", "parallel", "parallel", "arbitrary"),
            vmem_limit_bytes=_VMEM_BUDGET),
        cost_estimate=cost,
    )(x_stack, w_stack, b_stack)


# ---------------------------------------------------------------------------
# Kernel 2: scaled dot-product attention, all heads per grid step
#   grid = (B, Sq_tiles); q/k/v read straight out of the stacked bf16 projection
#   slab (3, B, S, d_model); output written lane-dense into (B, S, d_model).
# ---------------------------------------------------------------------------
def _attn_kernel(q_ref, k_ref, v_ref, *rest, num_heads, depth, use_mask):
    if use_mask:
        m_ref, o_ref, w_ref = rest
    else:
        o_ref, w_ref = rest

    q = q_ref[0, 0]            # (tq, d_model)  bf16
    k = k_ref[0, 0]            # (S,  d_model)  bf16
    v = v_ref[0, 0]            # (S,  d_model)  bf16
    if use_mask:
        masked = m_ref[0, 0] != 0   # int8 -> bool, (tq, S), computed once for all heads

    scale = jnp.float32(1.0 / math.sqrt(depth))
    neg = jnp.float32(-1000000000.0)

    for h in range(num_heads):           # static unroll over heads
        lo = h * depth
        qh = q[:, lo:lo + depth]
        kh = k[:, lo:lo + depth]
        vh = v[:, lo:lo + depth]

        # q @ k^T without an in-kernel transpose (contract the depth axes), bf16 MXU.
        s = jax.lax.dot_general(qh, kh, (((1,), (1,)), ((), ())),
                                preferred_element_type=jnp.float32) * scale
        if use_mask:
            s = jnp.where(masked, neg, s)

        # numerically stable softmax (f32 stats); reciprocal on the EUP + Newton step
        s = s - jnp.max(s, axis=-1, keepdims=True)
        e = jnp.exp(s)
        denom = jnp.sum(e, axis=-1, keepdims=True)
        r0 = pl.reciprocal(denom, approx=True)
        r = r0 * (2.0 - denom * r0)
        attn = e * r

        w_ref[0, h] = attn.astype(w_ref.dtype)

        # P @ V in bf16; write this head's columns straight into the output block
        # (bounds live vregs to ~one head; the HBM writeback stays one wide slab).
        head_out = jnp.dot(attn.astype(jnp.bfloat16), vh,
                           preferred_element_type=jnp.float32)
        o_ref[0, :, lo:lo + depth] = head_out.astype(o_ref.dtype)


def mha_attention(qkv, mask_i8, *, num_heads, weights_dtype=jnp.float32):
    """qkv: (3, B, S, d_model) stacked bf16 Q/K/V projections.
    mask_i8: (B, 1, S, S) int8 (nonzero = masked position) or None.
    Returns (out (B, S, d_model) bf16, weights (B, H, S, S) weights_dtype)."""
    _, B, S, dm = qkv.shape
    depth = dm // num_heads
    w_itemsize = jnp.dtype(weights_dtype).itemsize
    tq = _pick_attn_tq(S, dm, num_heads, w_itemsize, _VMEM_BUDGET)
    use_mask = mask_i8 is not None

    kernel = functools.partial(_attn_kernel, num_heads=num_heads, depth=depth,
                               use_mask=use_mask)
    out_shapes = (
        jax.ShapeDtypeStruct((B, S, dm), qkv.dtype),
        jax.ShapeDtypeStruct((B, num_heads, S, S), weights_dtype),
    )
    in_specs = [
        pl.BlockSpec((1, 1, tq, dm), lambda b, qi: (0, b, qi, 0)),   # q
        pl.BlockSpec((1, 1, S, dm), lambda b, qi: (1, b, 0, 0)),     # k (full S)
        pl.BlockSpec((1, 1, S, dm), lambda b, qi: (2, b, 0, 0)),     # v (full S)
    ]
    args = [qkv, qkv, qkv]
    if use_mask:
        in_specs.append(pl.BlockSpec((1, 1, tq, S), lambda b, qi: (b, 0, qi, 0)))
        args.append(mask_i8)

    cost = pl.CostEstimate(
        flops=int(4 * B * S * S * dm),
        transcendentals=int(B * num_heads * S * S),
        bytes_accessed=int(3 * B * S * dm * 2 + (B * S * S if use_mask else 0)
                           + B * S * dm * 2 + B * num_heads * S * S * w_itemsize),
    )

    return pl.pallas_call(
        kernel,
        out_shape=out_shapes,
        grid=(B, S // tq),
        in_specs=in_specs,
        out_specs=(
            pl.BlockSpec((1, tq, dm), lambda b, qi: (b, qi, 0)),
            pl.BlockSpec((1, num_heads, tq, S), lambda b, qi: (b, 0, qi, 0)),
        ),
        compiler_params=pltpu.CompilerParams(
            dimension_semantics=("parallel", "parallel"),
            vmem_limit_bytes=_VMEM_BUDGET),
        cost_estimate=cost,
    )(*args)


# ---------------------------------------------------------------------------
# Full module forward
# ---------------------------------------------------------------------------
class MultiHeadAttentionPallas:
    def __init__(self, d_model, num_heads, key, weights_dtype=jnp.float32):
        assert d_model % num_heads == 0
        self.d_model = d_model
        self.num_heads = num_heads
        self.depth = d_model // num_heads
        self.weights_dtype = weights_dtype

        keys = jax.random.split(key, 8)
        bound = 1.0 / math.sqrt(d_model)  # nn.Linear default init range

        def init_linear(kw, kb):
            # nn.Linear stores (out, in); keep it pre-transposed to (in, out)
            w = jax.random.uniform(kw, (d_model, d_model), jnp.float32, -bound, bound)
            b = jax.random.uniform(kb, (d_model,), jnp.float32, -bound, bound)
            return w.T, b

        wq_t, bq = init_linear(keys[0], keys[1])
        wk_t, bk = init_linear(keys[2], keys[3])
        wv_t, bv = init_linear(keys[4], keys[5])
        wo_t, bo = init_linear(keys[6], keys[7])

        # Fused Q/K/V parameters; weights live in bf16 (MXU-native), biases in f32.
        self.w_qkv = jnp.stack([wq_t, wk_t, wv_t]).astype(jnp.bfloat16)  # (3, dm, dm)
        self.b_qkv = jnp.stack([bq, bk, bv])[:, None, :]                 # (3, 1, dm) f32
        self.w_out = wo_t[None].astype(jnp.bfloat16)                     # (1, dm, dm)
        self.b_out = bo[None, None, :]                                   # (1, 1, dm) f32

    def __call__(self, v, k, q, mask):
        B, S, dm = q.shape
        # Fused projection path assumes q/k/v share (B, S, d_model).
        # TODO(synk): support differing K/V sequence length (cross-attention).
        assert k.shape == q.shape and v.shape == q.shape
        M = B * S

        if (q is k) and (q is v):
            x = q.reshape(1, M, dm)         # free reshape, x reused for all 3 groups
            shared = True
        else:
            x = jnp.stack([q.reshape(M, dm), k.reshape(M, dm), v.reshape(M, dm)])
            shared = False

        # Q/K/V projections: one tiled matmul kernel, grid (Mt, Nt, 3, Kt), bf16 out.
        qkv = fused_linear_pallas(x, self.w_qkv, self.b_qkv, x_shared=shared,
                                  out_dtype=jnp.bfloat16)
        qkv = qkv.reshape(3, B, S, dm)      # contiguous reshape, no transpose

        # Mask streamed as int8 (nonzero = masked), or skipped entirely if None.
        mask_i8 = None if mask is None else (mask == 0).astype(jnp.int8)

        # Attention: head split/merge folded into BlockSpecs + in-kernel column
        # slices; output lands directly in the merged (B, S, d_model) slab (bf16).
        attn_out, attn_weights = mha_attention(
            qkv, mask_i8, num_heads=self.num_heads, weights_dtype=self.weights_dtype)

        # Final projection (same tiled kernel, group size 1), f32 module output.
        out = fused_linear_pallas(attn_out.reshape(1, M, dm), self.w_out, self.b_out,
                                  out_dtype=jnp.float32)
        return out.reshape(B, S, dm), attn_weights


# ---------------------------------------------------------------------------
# Pure-JAX reference (correctness check; f32 math on bf16-rounded weights)
# ---------------------------------------------------------------------------
def reference_forward(mod, v, k, q, mask):
    B, S, _ = q.shape
    H, D, dm = mod.num_heads, mod.depth, mod.d_model

    def lin(x, w_t, b):
        return x @ w_t.astype(jnp.float32) + b

    def split(x):
        return jnp.transpose(x.reshape(B, S, H, D), (0, 2, 1, 3))

    qh = split(lin(q, mod.w_qkv[0], mod.b_qkv[0, 0]))
    kh = split(lin(k, mod.w_qkv[1], mod.b_qkv[1, 0]))
    vh = split(lin(v, mod.w_qkv[2], mod.b_qkv[2, 0]))
    scores = jnp.einsum("bhqd,bhkd->bhqk", qh, kh) / math.sqrt(D)
    if mask is not None:
        scores = jnp.where(mask == 0, -1000000000.0, scores)
    w = jax.nn.softmax(scores, axis=-1)
    out = jnp.einsum("bhqk,bhkd->bhqd", w, vh)
    out = jnp.transpose(out, (0, 2, 1, 3)).reshape(B, S, dm)
    return lin(out, mod.w_out[0], mod.b_out[0, 0]), w


if __name__ == "__main__":
    B, S, d_model, num_heads = 2, 8, 32, 4

    key = jax.random.PRNGKey(0)
    k_mod, k_q, k_k, k_v = jax.random.split(key, 4)

    mod = MultiHeadAttentionPallas(d_model, num_heads, k_mod)

    q = jax.random.normal(k_q, (B, S, d_model), jnp.float32)
    k = jax.random.normal(k_k, (B, S, d_model), jnp.float32)
    v = jax.random.normal(k_v, (B, S, d_model), jnp.float32)
    # causal mask, broadcast over heads: (B, 1, S, S)
    mask = jnp.broadcast_to(
        jnp.tril(jnp.ones((S, S), jnp.float32))[None, None, :, :], (B, 1, S, S))

    # bf16 matmul operands -> relaxed tolerances vs the f32 reference.
    ATOL = 3e-2

    # --- cross-input path (distinct q/k/v) ---
    out, attn_w = mod(v, k, q, mask)
    out = jax.block_until_ready(out)
    attn_w = jax.block_until_ready(attn_w)
    ref_out, ref_w = reference_forward(mod, v, k, q, mask)
    assert out.shape == (B, S, d_model)
    assert attn_w.shape == (B, num_heads, S, S)
    assert jnp.allclose(out, ref_out, atol=ATOL, rtol=ATOL)
    assert jnp.allclose(attn_w, ref_w, atol=ATOL, rtol=ATOL)

    # --- self-attention path (shared activation, revisited x block) ---
    out2, attn_w2 = mod(q, q, q, mask)
    out2 = jax.block_until_ready(out2)
    ref_out2, ref_w2 = reference_forward(mod, q, q, q, mask)
    assert jnp.allclose(out2, ref_out2, atol=ATOL, rtol=ATOL)
    assert jnp.allclose(attn_w2, ref_w2, atol=ATOL, rtol=ATOL)

    print("KERNEL_OK")
</pallas_src>

<mosaic_0001>
module attributes {stable_mosaic.version = 11 : i64} {
  func.func @_linear_kernel(%arg0: i32, %arg1: i32, %arg2: i32, %arg3: i32, %arg4: memref<1x16x32xf32, #tpu.memory_space<vmem>>, %arg5: memref<1x32x32xbf16, #tpu.memory_space<vmem>>, %arg6: memref<1x1x32xf32, #tpu.memory_space<vmem>>, %arg7: memref<1x16x32xbf16, #tpu.memory_space<vmem>>, %arg8: memref<16x32xf32, #tpu.memory_space<vmem>>) attributes {dimension_semantics = [#tpu.dimension_semantics<parallel>, #tpu.dimension_semantics<parallel>, #tpu.dimension_semantics<parallel>, #tpu.dimension_semantics<arbitrary>], iteration_bounds = array<i64: 1, 1, 3, 1>, scalar_prefetch = 0 : i64, scratch_operands = 1 : i64, tpu.core_type = #tpu.core_type<tc>, window_params = [{transform_indices = @transform_0, window_bounds = array<i64: 1, 16, 32>}, {transform_indices = @transform_1, window_bounds = array<i64: 1, 32, 32>}, {transform_indices = @transform_2, window_bounds = array<i64: 1, 1, 32>}, {transform_indices = @transform_3, window_bounds = array<i64: 1, 16, 32>}]} {
    %c0_i32 = arith.constant 0 : i32
    %0 = arith.cmpi eq, %arg3, %c0_i32 : i32
    %1 = arith.extui %0 : i1 to i32
    %c0_i32_0 = arith.constant 0 : i32
    %2 = arith.cmpi ne, %1, %c0_i32_0 : i32
    scf.if %2 {
      %cst_12 = arith.constant 0.000000e+00 : f32
      %15 = vector.broadcast %cst_12 : f32 to vector<16x32xf32>
      %c0_13 = arith.constant 0 : index
      %c0_14 = arith.constant 0 : index
      %16 = vector.load %arg8[%c0_13, %c0_14] : memref<16x32xf32, #tpu.memory_space<vmem>>, vector<16x32xf32>
      tpu.vector_store %arg8[%c0_13, %c0_14], %15 {strides = array<i32>} : memref<16x32xf32, #tpu.memory_space<vmem>>, vector<16x32xf32>,
    } else {
    }
    %c0 = arith.constant 0 : index
    %c0_1 = arith.constant 0 : index
    %3 = vector.load %arg8[%c0, %c0_1] : memref<16x32xf32, #tpu.memory_space<vmem>>, vector<16x32xf32>
    %c0_2 = arith.constant 0 : index
    %c0_3 = arith.constant 0 : index
    %c0_4 = arith.constant 0 : index
    %4 = vector.load %arg4[%c0_2, %c0_3, %c0_4] : memref<1x16x32xf32, #tpu.memory_space<vmem>>, vector<1x16x32xf32>
    %5 = vector.shape_cast %4 : vector<1x16x32xf32> to vector<16x32xf32>
    %6 = arith.truncf %5 : vector<16x32xf32> to vector<16x32xbf16>
    %c0_5 = arith.constant 0 : index
    %c0_6 = arith.constant 0 : index
    %c0_7 = arith.constant 0 : index
    %7 = vector.load %arg5[%c0_5, %c0_6, %c0_7] : memref<1x32x32xbf16, #tpu.memory_space<vmem>>, vector<1x32x32xbf16>
    %8 = vector.shape_cast %7 : vector<1x32x32xbf16> to vector<32x32xbf16>
    %cst = arith.constant dense<0.000000e+00> : vector<16x32xf32>
    %9 = tpu.matmul %6, %8, %cst {dimension_numbers = #tpu.dot_dimension_numbers<[1], [0], [0], [1], [0, 0, 1, 1], [], []>} : vector<16x32xbf16>, vector<32x32xbf16>, vector<16x32xf32> -> vector<16x32xf32>
    %10 = arith.addf %3, %9 : vector<16x32xf32>
    %c0_8 = arith.constant 0 : index
    %c0_9 = arith.constant 0 : index
    %11 = vector.load %arg8[%c0_8, %c0_9] : memref<16x32xf32, #tpu.memory_space<vmem>>, vector<16x32xf32>
    tpu.vector_store %arg8[%c0_8, %c0_9], %10 {strides = array<i32>} : memref<16x32xf32, #tpu.memory_space<vmem>>, vector<16x32xf32>,
    %c0_i32_10 = arith.constant 0 : i32
    %12 = arith.cmpi eq, %arg3, %c0_i32_10 : i32
    %13 = arith.extui %12 : i1 to i32
    %c0_i32_11 = arith.constant 0 : i32
    %14 = arith.cmpi ne, %13, %c0_i32_11 : i32
    scf.if %14 {
      %c0_12 = arith.constant 0 : index
      %c0_13 = arith.constant 0 : index
      %15 = vector.load %arg8[%c0_12, %c0_13] : memref<16x32xf32, #tpu.memory_space<vmem>>, vector<16x32xf32>
      %c0_14 = arith.constant 0 : index
      %c0_15 = arith.constant 0 : index
      %c0_16 = arith.constant 0 : index
      %16 = vector.load %arg6[%c0_14, %c0_15, %c0_16] : memref<1x1x32xf32, #tpu.memory_space<vmem>>, vector<1x1x32xf32>
      %17 = vector.shape_cast %16 : vector<1x1x32xf32> to vector<1x32xf32>
      %18 = vector.broadcast %17 : vector<1x32xf32> to vector<16x32xf32>
      %19 = arith.addf %15, %18 : vector<16x32xf32>
      %20 = arith.truncf %19 : vector<16x32xf32> to vector<16x32xbf16>
      %c0_17 = arith.constant 0 : index
      %c0_18 = arith.constant 0 : index
      %c0_19 = arith.constant 0 : index
      %21 = vector.load %arg7[%c0_17, %c0_18, %c0_19] : memref<1x16x32xbf16, #tpu.memory_space<vmem>>, vector<1x16x32xbf16>
      %22 = vector.shape_cast %21 : vector<1x16x32xbf16> to vector<16x32xbf16>
      %23 = vector.shape_cast %20 : vector<16x32xbf16> to vector<1x16x32xbf16>
      tpu.vector_store %arg7[%c0_17, %c0_18, %c0_19], %23 {strides = array<i32>} : memref<1x16x32xbf16, #tpu.memory_space<vmem>>, vector<1x16x32xbf16>,
    } else {
    }
    return
  }
  func.func @transform_0(%arg0: i32, %arg1: i32, %arg2: i32, %arg3: i32) -> (i32, i32, i32) {
    %c0_i32 = arith.constant 0 : i32
    return %arg2, %arg0, %arg3 : i32, i32, i32
  }
  func.func @transform_1(%arg0: i32, %arg1: i32, %arg2: i32, %arg3: i32) -> (i32, i32, i32) {
    %c0_i32 = arith.constant 0 : i32
    return %arg2, %arg3, %arg1 : i32, i32, i32
  }
  func.func @transform_2(%arg0: i32, %arg1: i32, %arg2: i32, %arg3: i32) -> (i32, i32, i32) {
    %c0_i32 = arith.constant 0 : i32
    %c0_i32_0 = arith.constant 0 : i32
    return %arg2, %c0_i32, %arg1 : i32, i32, i32
  }
  func.func @transform_3(%arg0: i32, %arg1: i32, %arg2: i32, %arg3: i32) -> (i32, i32, i32) {
    %c0_i32 = arith.constant 0 : i32
    return %arg2, %arg0, %arg1 : i32, i32, i32
  }
}

</mosaic_0001>

<llo_original>
// kernel: tpu_custom_call.1
$region0: #{tpu_custom_call.1}
  #allocation0 [shape = 'u32[]', space=smem, size = 0x4, offset = 0x4, fixed_abs, tag = 'smem constant byte address 0x4 - core index']
  #allocation1 [shape = 'u32[72,128]{1,0:T(1,128)}', space=vmem, size = 0x9000, scoped, tag = 'internal scratch']
  #allocation2 [shape = 'f32[16,32]{1,0:T(8,128)}', space=vmem, size = 0x2000, scoped, tag = 'scratch operand']
  %s0 = inlined_call_operand.hbm [shape: f32[3,16,32], index: 0, kind: input, shape index: {}]
  %s1 = inlined_call_operand.hbm [shape: bf16[3,32,32], index: 1, kind: input, shape index: {}]
  %s2 = inlined_call_operand.hbm [shape: f32[3,1,32], index: 2, kind: input, shape index: {}]
  %s3 = inlined_call_operand.hbm [shape: bf16[3,16,32], index: 3, kind: output, shape index: {}]
  %s4 = sld [smem:[#allocation0]]
  $region65: #{tpu_custom_call.1} parent=0
    _
  %s6 = ssub.s32 1, %s4
  %s7 = scalar_select 0, %s6, %s4
  $region1: #{tpu_custom_call.1} parent=0
    #allocation3 [shape = 'u8[16384]{0}', space=vmem, size = 0x4000, scoped, tag = 'input window, operand 0']
    #allocation4 [shape = 's32[2]{0}', space=sflag, size = 0x8, scoped, tag = 'scoped memory for tpu_custom_call.1']
    #allocation5 [shape = 's32[2]{0}', space=sflag, size = 0x8, scoped, tag = 'scoped memory for tpu_custom_call.1']
    #allocation6 [shape = 'u8[16384]{0}', space=vmem, size = 0x4000, scoped, tag = 'input window, operand 1']
    #allocation7 [shape = 's32[2]{0}', space=sflag, size = 0x8, scoped, tag = 'scoped memory for tpu_custom_call.1']
    #allocation8 [shape = 'u8[1024]{0}', space=vmem, size = 0x400, scoped, tag = 'input window, operand 2']
    #allocation9 [shape = 'u8[8192]{0}', space=vmem, size = 0x2000, scoped, tag = 'output window, operand 0']
    %8 = vsyncpa [#allocation4], 0
    %s9 = scalar_lea.sflag [#allocation4], 1
    %10 = vsyncpa %s9, 0
    %11 = vsyncpa [#allocation7], 0
    %s12 = scalar_lea.sflag [#allocation7], 1
    %13 = vsyncpa %s12, 0
    %14 = vsyncpa [#allocation5], 0
    %s15 = scalar_lea.sflag [#allocation5], 1
    %16 = vsyncpa %s15, 0
    loop: start=0, step=1, limit=5
    $region2: #{tpu_custom_call.1} parent=1 // loop_pre_header
      _
    $region3: #{tpu_custom_call.1} parent=1 // loop_header
      %s18 = sphi 0, %s22
      %p19 = scmp.ge.s32.totalorder %s18, 5
      %s25 = sphi 0, %s51
      %s26 = sphi 0, %s47
      %s27 = sphi 0, %s43
      %s28 = sphi 0, %s39
      %s29 = sphi 0, %s25
      %s30 = sphi 0, %s26
      %s31 = sphi 0, %s27
      %s32 = sphi 0, %s28
      %s33 = sphi 0, %s29
      %s34 = sphi 0, %s30
      %s35 = sphi 0, %s31
      %s36 = sphi 0, %s32
      %s58 = sphi 0, %s60
      %s61 = sphi 0, %s58
      %s62 = sphi 0, %s61
      %s78 = sphi 0, %s62
      %s88 = sphi 0, %s90
      %s91 = sphi 0, %s88
      %s92 = sphi 0, %s91
      %s108 = sphi 0, %s92
      %s116 = sphi 0, %s118
      %s119 = sphi 0, %s116
      %s120 = sphi 0, %s119
      %s136 = sphi 0, %s120
      %s146 = sphi 0, %s148
      %s149 = sphi 0, %s146
      %s150 = sphi 0, %s149
      %s166 = sphi 0, %s150
    $region4: #{tpu_custom_call.1} parent=1 // loop_header_branch
      %21 = sbr.rel (%p19) target = $region8
    $region5: #{tpu_custom_call.1} parent=1 // loop_body
      %s23 = ssub.s32 %s18, 1
      %s24 = ssub.s32 %s18, 2
      %s37 = sadd.s32 1, %s28
      %p38 = scmp.ge.s32.totalorder %s37, 1
      %s39 = scalar_select %p38, 0, %s37
      %s40 = sadd.s32 1, %s27
      %s41 = scalar_select %p38, %s40, %s27
      %p42 = scmp.ge.s32.totalorder %s41, 3
      %s43 = scalar_select %p42, 0, %s41
      %s44 = sadd.s32 1, %s26
      %s45 = scalar_select %p42, %s44, %s26
      %p46 = scmp.ge.s32.totalorder %s45, 1
      %s47 = scalar_select %p46, 0, %s45
      %s48 = sadd.s32 1, %s25
      %s49 = scalar_select %p46, %s48, %s25
      %p50 = scmp.ge.s32.totalorder %s49, 1
      %s51 = scalar_select %p50, 0, %s49
      %s52 = ssub.s32 %s27, %s43
      %s53 = ssub.s32 %s25, %s51
      %s54 = sor.u32 %s52, %s53
      %s55 = ssub.s32 %s28, %s39
      %s56 = sor.u32 %s54, %s55
      %p57 = scmp.eq.s32.totalorder %s56, 0
      %s59 = sadd.s32 %s58, 1
      %s60 = scalar_select %p57, %s58, %s59
      %p63 = pneg %p57
      %p64 = scmp.eq.s32.totalorder %s18, 2
      %p65 = por %p63, %p64
      %p66 = scmp.ne.s32.totalorder %s58, %s61
      %p67 = scmp.eq.s32.totalorder %s18, 0
      %p68 = por %p66, %p67
      %p69 = scmp.ne.s32.totalorder %s58, %s61
      %p70 = scmp.eq.s32.totalorder %s23, 2
      %p71 = por %p69, %p70
      %p72 = scmp.ne.s32.totalorder %s61, %s62
      %p73 = scmp.eq.s32.totalorder %s23, 0
      %p74 = por %p72, %p73
      %p75 = scmp.ne.s32.totalorder %s61, %s62
      %p76 = scmp.eq.s32.totalorder %s24, 2
      %p77 = por %p75, %p76
      %p79 = scmp.ne.s32.totalorder %s62, %s78
      %p80 = scmp.eq.s32.totalorder %s24, 0
      %p81 = por %p79, %p80
      %s82 = ssub.s32 %s27, %s43
      %s83 = ssub.s32 %s28, %s39
      %s84 = sor.u32 %s82, %s83
      %s85 = ssub.s32 %s26, %s47
      %s86 = sor.u32 %s84, %s85
      %p87 = scmp.eq.s32.totalorder %s86, 0
      %s89 = sadd.s32 %s88, 1
      %s90 = scalar_select %p87, %s88, %s89
      %p93 = pneg %p87
      %p94 = scmp.eq.s32.totalorder %s18, 2
      %p95 = por %p93, %p94
      %p96 = scmp.ne.s32.totalorder %s88, %s91
      %p97 = scmp.eq.s32.totalorder %s18, 0
      %p98 = por %p96, %p97
      %p99 = scmp.ne.s32.totalorder %s88, %s91
      %p100 = scmp.eq.s32.totalorder %s23, 2
      %p101 = por %p99, %p100
      %p102 = scmp.ne.s32.totalorder %s91, %s92
      %p103 = scmp.eq.s32.totalorder %s23, 0
      %p104 = por %p102, %p103
      %p105 = scmp.ne.s32.totalorder %s91, %s92
      %p106 = scmp.eq.s32.totalorder %s24, 2
      %p107 = por %p105, %p106
      %p109 = scmp.ne.s32.totalorder %s92, %s108
      %p110 = scmp.eq.s32.totalorder %s24, 0
      %p111 = por %p109, %p110
      %s112 = ssub.s32 %s27, %s43
      %s113 = ssub.s32 %s26, %s47
      %s114 = sor.u32 %s112, %s113
      %p115 = scmp.eq.s32.totalorder %s114, 0
      %s117 = sadd.s32 %s116, 1
      %s118 = scalar_select %p115, %s116, %s117
      %p121 = pneg %p115
      %p122 = scmp.eq.s32.totalorder %s18, 2
      %p123 = por %p121, %p122
      %p124 = scmp.ne.s32.totalorder %s116, %s119
      %p125 = scmp.eq.s32.totalorder %s18, 0
      %p126 = por %p124, %p125
      %p127 = scmp.ne.s32.totalorder %s116, %s119
      %p128 = scmp.eq.s32.totalorder %s23, 2
      %p129 = por %p127, %p128
      %p130 = scmp.ne.s32.totalorder %s119, %s120
      %p131 = scmp.eq.s32.totalorder %s23, 0
      %p132 = por %p130, %p131
      %p133 = scmp.ne.s32.totalorder %s119, %s120
      %p134 = scmp.eq.s32.totalorder %s24, 2
      %p135 = por %p133, %p134
      %p137 = scmp.ne.s32.totalorder %s120, %s136
      %p138 = scmp.eq.s32.totalorder %s24, 0
      %p139 = por %p137, %p138
      %s140 = ssub.s32 %s27, %s43
      %s141 = ssub.s32 %s25, %s51
      %s142 = sor.u32 %s140, %s141
      %s143 = ssub.s32 %s26, %s47
      %s144 = sor.u32 %s142, %s143
      %p145 = scmp.eq.s32.totalorder %s144, 0
      %s147 = sadd.s32 %s146, 1
      %s148 = scalar_select %p145, %s146, %s147
      %p151 = pneg %p145
      %p152 = scmp.eq.s32.totalorder %s18, 2
      %p153 = por %p151, %p152
      %p154 = scmp.ne.s32.totalorder %s146, %s149
      %p155 = scmp.eq.s32.totalorder %s18, 0
      %p156 = por %p154, %p155
      %p157 = scmp.ne.s32.totalorder %s146, %s149
      %p158 = scmp.eq.s32.totalorder %s23, 2
      %p159 = por %p157, %p158
      %p160 = scmp.ne.s32.totalorder %s149, %s150
      %p161 = scmp.eq.s32.totalorder %s23, 0
      %p162 = por %p160, %p161
      %p163 = scmp.ne.s32.totalorder %s149, %s150
      %p164 = scmp.eq.s32.totalorder %s24, 2
      %p165 = por %p163, %p164
      %p167 = scmp.ne.s32.totalorder %s150, %s166
      %p168 = scmp.eq.s32.totalorder %s24, 0
      %p169 = por %p167, %p168
      %p170 = scmp.le.s32.totalorder 1, %s18
      %p171 = scmp.lt.s32.totalorder %s18, 4
      %p172 = pnand %p170, %p171
      %p173 = pneg %p172
      // Predicated region
      $region9: #{tpu_custom_call.1} parent=5 // pred_check
        _
      $region10: #{tpu_custom_call.1} parent=5 // pred_check_branch
        %175 = sbr.rel (%p172) target = $region12
      $region11: #{tpu_custom_call.1} parent=5 // pred_region
        %s176 = ssub.s32 %s18, 1
      $region12: #{tpu_custom_call.1} parent=5 // pred_fallthru
        _
      %p177 = scmp.lt.s32.totalorder %s18, 3
      // Predicated region
      $region13: #{tpu_custom_call.1} parent=5 // pred_check
        %p178 = pneg %p177
      $region14: #{tpu_custom_call.1} parent=5 // pred_check_branch
        %180 = sbr.rel (%p178) target = $region16
      $region15: #{tpu_custom_call.1} parent=5 // pred_region
        // Predicated region
        $region17: #{tpu_custom_call.1} parent=15 // pred_check
          %p181 = pneg %p68
        $region18: #{tpu_custom_call.1} parent=15 // pred_check_branch
          %183 = sbr.rel (%p181) target = $region20
        $region19: #{tpu_custom_call.1} parent=15 // pred_region
          %s184 = sand.u32 %s58, 1
          %s185 = scalar_lea.sflag [#allocation4], %s184
          %s186 = sand.u32 %s58, 1
          %s187 = smul.addr %s186, 16
          %s188 = scalar_lea.vmem [#allocation3], %s187
          %s189 = smul.u32 2, %s25
          %191 = vsyncadd %s185, 0
          %s192 = sadd.s32 %s28, %s189
          %s193 = smul.addr %s27, 2
          %s194 = sadd.s32 %s192, %s193
          %s195 = smul.addr %s194, 8
          %s196 = scalar_lea.hbm %s0, %s195
          %s197 = sshll.u32 %s196, 4
          %s198 = int_to_ptr.hbm [resolvable:$true] %s197
          %s199 = sshll.u32 %s188, 4
          %s200 = int_to_ptr.vmem [resolvable:$true] %s199
          %205 = dma.hbm_to_vmem [thread:$0]  %s198, 256, %s200, %s185, 128, 128, 8
        $region20: #{tpu_custom_call.1} parent=15 // pred_fallthru
          _
        // Predicated region
        $region21: #{tpu_custom_call.1} parent=15 // pred_check
          %p206 = pneg %p98
        $region22: #{tpu_custom_call.1} parent=15 // pred_check_branch
          %208 = sbr.rel (%p206) target = $region24
        $region23: #{tpu_custom_call.1} parent=15 // pred_region
          %s209 = sand.u32 %s18, 1
          %s210 = scalar_lea.sflag [#allocation7], %s209
          %s211 = sand.u32 %s88, 1
          %s212 = smul.addr %s211, 16
          %s213 = scalar_lea.vmem [#allocation6], %s212
          %s214 = smul.u32 4, %s28
          %216 = vsyncadd %s210, 0
          %s217 = sadd.s32 %s26, %s214
          %s218 = smul.addr %s27, 4
          %s219 = sadd.s32 %s217, %s218
          %s220 = smul.addr %s219, 4
          %s221 = scalar_lea.hbm %s1, %s220
          %s222 = sshll.u32 %s221, 4
          %s223 = int_to_ptr.hbm [resolvable:$true] %s222
          %s224 = sshll.u32 %s213, 4
          %s225 = int_to_ptr.vmem [resolvable:$true] %s224
          %230 = dma.hbm_to_vmem [thread:$0]  %s223, 256, %s225, %s210, 64, 64, 4
        $region24: #{tpu_custom_call.1} parent=15 // pred_fallthru
          _
        // Predicated region
        $region25: #{tpu_custom_call.1} parent=15 // pred_check
          %p231 = pneg %p126
        $region26: #{tpu_custom_call.1} parent=15 // pred_check_branch
          %233 = sbr.rel (%p231) target = $region28
        $region27: #{tpu_custom_call.1} parent=15 // pred_region
          %s234 = sand.u32 %s18, 1
          %s235 = scalar_lea.sflag [#allocation7], %s234
          %s236 = sand.u32 %s116, 1
          %s237 = scalar_lea.vmem [#allocation8], %s236
          %239 = vsyncadd %s235, 0
          %s240 = sadd.s32 %s26, %s27
          %s241 = scalar_lea.hbm %s2, %s240
          %s243 = sshll.u32 %s241, 4
          %s244 = int_to_ptr.hbm [resolvable:$true] %s243
          %s245 = sshll.u32 %s237, 4
          %s246 = int_to_ptr.vmem [resolvable:$true] %s245
          %248 = dma.hbm_to_vmem [thread:$0]  %s244, 16, %s246, %s235
        $region28: #{tpu_custom_call.1} parent=15 // pred_fallthru
          _
      $region16: #{tpu_custom_call.1} parent=5 // pred_fallthru
        _
      %p249 = scmp.le.s32.totalorder 1, %s18
      %p250 = scmp.lt.s32.totalorder %s18, 4
      %p251 = pnand %p249, %p250
      %p252 = pneg %p251
      // Predicated region
      $region29: #{tpu_custom_call.1} parent=5 // pred_check
        _
      $region30: #{tpu_custom_call.1} parent=5 // pred_check_branch
        %254 = sbr.rel (%p251) target = $region32
      $region31: #{tpu_custom_call.1} parent=5 // pred_region
        %s255 = ssub.s32 %s18, 1
        %s256 = sand.u32 %s61, 1
        %s257 = scalar_lea.sflag [#allocation4], %s256
        %s258 = sand.u32 %s61, 1
        %s259 = smul.addr %s258, 16
        %s260 = scalar_lea.vmem [#allocation3], %s259
        // Predicated region
        $region33: #{tpu_custom_call.1} parent=31 // pred_check
          %p261 = pneg %p74
        $region34: #{tpu_custom_call.1} parent=31 // pred_check_branch
          %263 = sbr.rel (%p261) target = $region36
        $region35: #{tpu_custom_call.1} parent=31 // pred_region
          %265 = dma.done %s257, 256
        $region36: #{tpu_custom_call.1} parent=31 // pred_fallthru
          _
        %s266 = sand.u32 %s23, 1
        %s267 = scalar_lea.sflag [#allocation7], %s266
        %s268 = sand.u32 %s91, 1
        %s269 = smul.addr %s268, 16
        %s270 = scalar_lea.vmem [#allocation6], %s269
        // Predicated region
        $region37: #{tpu_custom_call.1} parent=31 // pred_check
          %p271 = pneg %p104
        $region38: #{tpu_custom_call.1} parent=31 // pred_check_branch
          %273 = sbr.rel (%p271) target = $region40
        $region39: #{tpu_custom_call.1} parent=31 // pred_region
          %275 = dma.done %s267, 256
        $region40: #{tpu_custom_call.1} parent=31 // pred_fallthru
          _
        %s276 = sand.u32 %s23, 1
        %s277 = scalar_lea.sflag [#allocation7], %s276
        %s278 = sand.u32 %s119, 1
        %s279 = scalar_lea.vmem [#allocation8], %s278
        // Predicated region
        $region41: #{tpu_custom_call.1} parent=31 // pred_check
          %p280 = pneg %p132
        $region42: #{tpu_custom_call.1} parent=31 // pred_check_branch
          %282 = sbr.rel (%p280) target = $region44
        $region43: #{tpu_custom_call.1} parent=31 // pred_region
          %284 = dma.done %s277, 16
        $region44: #{tpu_custom_call.1} parent=31 // pred_fallthru
          _
        %s285 = sand.u32 %s61, 1
        %s286 = scalar_lea.sflag [#allocation4], %s285
        %s287 = sand.u32 %s61, 1
        %s288 = smul.addr %s287, 16
        %s289 = scalar_lea.vmem [#allocation3], %s288
        %p290 = pneg %p74
        %p291 = pneg %p71
        %s292 = sand.u32 %s23, 1
        %s293 = scalar_lea.sflag [#allocation7], %s292
        %s294 = sand.u32 %s91, 1
        %s295 = smul.addr %s294, 16
        %s296 = scalar_lea.vmem [#allocation6], %s295
        %p297 = pneg %p104
        %p298 = pneg %p101
        %s299 = sand.u32 %s23, 1
        %s300 = scalar_lea.sflag [#allocation7], %s299
        %s301 = sand.u32 %s119, 1
        %s302 = scalar_lea.vmem [#allocation8], %s301
        %p303 = pneg %p132
        %p304 = pneg %p129
        %p305 = pneg %p162
        %p306 = pneg %p159
        %s307 = sand.u32 %s149, 1
        %s308 = scalar_lea.sflag [#allocation5], %s307
        %s309 = sand.u32 %s149, 1
        %s310 = smul.addr %s309, 8
        %s311 = scalar_lea.vmem [#allocation9], %s310
        %s312 = smul.u32 2, %s29
        %s313 = smul.u32 4, %s32
        %s314 = smul.u32 2, %s29
        %p316 = scmp.eq.s32.totalorder %s32, 0
        // Predicated region
        $region45: #{tpu_custom_call.1} parent=31 // pred_check
          %p317 = pneg %p316
        $region46: #{tpu_custom_call.1} parent=31 // pred_check_branch
          %319 = sbr.rel (%p317) target = $region48
        $region47: #{tpu_custom_call.1} parent=31 // pred_region
          %vm320 = vcmask 261120
          %321 = vst.msk [vmem:[#allocation2] sm:$0xff] %vm320, 0.0
          %322 = vst.msk [vmem:[#allocation2 + $0x8] sm:$0xff] %vm320, 0.0
        $region48: #{tpu_custom_call.1} parent=31 // pred_fallthru
          _
        %v323 = vld [vmem:[#allocation2] sm:$0xff]
        %v324 = vld [vmem:[#allocation2 + $0x8] sm:$0xff]
        %v325 = vld [vmem:[%s260] sm:$0xff]
        %v326 = vld [vmem:[%s260 + $0x8] sm:$0xff]
        %v327 = vpack.c.bf16 %v326, %v325
        %v328 = vld [vmem:[%s270] sm:$0xf]
        %v329 = vld [vmem:[%s270 + $0x4] sm:$0xf]
        %v330 = vld [vmem:[%s270 + $0x8] sm:$0xf]
        %v331 = vld [vmem:[%s270 + $0xc] sm:$0xf]
        %v336 = vunpack.c.l.b16 %v328
        %v337 = vunpack.c.l.b16 %v329
        %v338 = vunpack.c.l.b16 %v330
        %v339 = vunpack.c.l.b16 %v331
        %v340 = vpack.c.b16 %v337, %v336
        %v341 = vpack.c.b16 %v339, %v338
        %vm344 = vcmask 261120
        %v346 = vsel %vm344, %v327, 0
        %348 = vmatpush.bf16.msra.mxu0 0
        %349 = vmatpush.bf16.msra.mxu0 0
        %350 = vmatpush.bf16.msra.mxu0 0
        %351 = vmatpush.bf16.msra.mxu0 0
        %352 = vmatpush.bf16.msra.mxu0 0
        %353 = vmatpush.bf16.msra.mxu0 0
        %354 = vmatpush.bf16.msra.mxu0 %v341
        %355 = vmatpush.bf16.msra.mxu0 %v340
        %356 = vmatmul.bf16.gmra.mxu0 %v346
        %v357 = vpop.f32.mrf.mxu0
        %v358 = vadd.f32 0.0, %v357
        %v359 = vpop.f32.mrf.mxu0
        %v360 = vadd.f32 0.0, %v359
        %361 = vdwg.mxu0
        %v362 = vadd.f32 %v323, %v358
        %v363 = vadd.f32 %v324, %v360
        %364 = vst.msk [vmem:[#allocation2] sm:$0xff] %vm344, %v362
        %365 = vst.msk [vmem:[#allocation2 + $0x8] sm:$0xff] %vm344, %v363
        // Predicated region
        $region49: #{tpu_custom_call.1} parent=31 // pred_check
          %p366 = pneg %p316
        $region50: #{tpu_custom_call.1} parent=31 // pred_check_branch
          %368 = sbr.rel (%p366) target = $region52
        $region51: #{tpu_custom_call.1} parent=31 // pred_region
          %v369 = vld [vmem:[#allocation2] sm:$0xff]
          %v370 = vld [vmem:[#allocation2 + $0x8] sm:$0xff]
          %v371 = vld [vmem:[%s279] sm:$0x1]
          %v373 = vperm.slane %v371, 0
          %v375 = vadd.f32 %v369, %v373
          %v376 = vadd.f32 %v370, %v373
          %v377 = vpack.c.bf16 %v375, %v375
          %v378 = vpack.c.bf16 %v376, %v376
          %vm379 = vcmask 257024
          %380 = vst.msk [vmem:[%s311] sm:$0xf] %vm379, %v377
          %381 = vst.msk [vmem:[%s311 + $0x4] sm:$0xf] %vm379, %v378
        $region52: #{tpu_custom_call.1} parent=31 // pred_fallthru
          _
        %s382 = sand.u32 %s149, 1
        %s383 = scalar_lea.sflag [#allocation5], %s382
        %s384 = sand.u32 %s149, 1
        %s385 = smul.addr %s384, 8
        %s386 = scalar_lea.vmem [#allocation9], %s385
        // Predicated region
        $region53: #{tpu_custom_call.1} parent=31 // pred_check
          %p387 = pneg %p159
        $region54: #{tpu_custom_call.1} parent=31 // pred_check_branch
          %389 = sbr.rel (%p387) target = $region56
        $region55: #{tpu_custom_call.1} parent=31 // pred_region
          %s390 = smul.u32 2, %s29
          %392 = vsyncadd %s383, 0
          %s393 = sadd.s32 %s30, %s390
          %s394 = smul.addr %s31, 2
          %s395 = sadd.s32 %s393, %s394
          %s396 = smul.addr %s395, 4
          %s397 = scalar_lea.hbm %s3, %s396
          %s398 = sshll.u32 %s386, 4
          %s399 = int_to_ptr.vmem [resolvable:$true] %s398
          %s400 = sshll.u32 %s397, 4
          %s401 = int_to_ptr.hbm [resolvable:$true] %s400
          %406 = dma.vmem_to_hbm [thread:$0]  %s399, 128, %s401, %s383, 64, 64, 4
        $region56: #{tpu_custom_call.1} parent=31 // pred_fallthru
          _
      $region32: #{tpu_custom_call.1} parent=5 // pred_fallthru
        _
      %p407 = scmp.le.s32.totalorder 2, %s18
      // Predicated region
      $region57: #{tpu_custom_call.1} parent=5 // pred_check
        %p408 = pneg %p407
      $region58: #{tpu_custom_call.1} parent=5 // pred_check_branch
        %410 = sbr.rel (%p408) target = $region60
      $region59: #{tpu_custom_call.1} parent=5 // pred_region
        %s411 = ssub.s32 %s18, 2
        // Predicated region
        $region61: #{tpu_custom_call.1} parent=59 // pred_check
          %p412 = pneg %p165
        $region62: #{tpu_custom_call.1} parent=59 // pred_check_branch
          %414 = sbr.rel (%p412) target = $region64
        $region63: #{tpu_custom_call.1} parent=59 // pred_region
          %s415 = sand.u32 %s150, 1
          %s416 = scalar_lea.sflag [#allocation5], %s415
          %s417 = sand.u32 %s150, 1
          %s418 = smul.addr %s417, 8
          %s419 = scalar_lea.vmem [#allocation9], %s418
          %421 = dma.done %s416, 128
        $region64: #{tpu_custom_call.1} parent=59 // pred_fallthru
          _
      $region60: #{tpu_custom_call.1} parent=5 // pred_fallthru
        _
    $region6: #{tpu_custom_call.1} parent=1 // loop_footer
      %s22 = sadd.s32 1, %s18
    $region7: #{tpu_custom_call.1} parent=1 // loop_footer_branch
      %17 = sbr.rel target = $region3
    $region8: #{tpu_custom_call.1} parent=1 // loop_exit
      _
    %422 = vsyncpa [#allocation4], 1
    %s423 = scalar_lea.sflag [#allocation4], 1
    %424 = vsyncpa %s423, 1
    %425 = vsyncpa [#allocation7], 1
    %s426 = scalar_lea.sflag [#allocation7], 1
    %427 = vsyncpa %s426, 1
    %428 = vsyncpa [#allocation5], 1
    %s429 = scalar_lea.sflag [#allocation5], 1
    %430 = vsyncpa %s429, 1

</llo_original>
